<compile_context>
chip_gen: v5e
topology: v5e:2x2
jax: 0.10.0
libtpu: 0.0.40
codegen_flags: <defaults>
</compile_context>

<pallas_src>
import functools
import math

import jax
import jax.numpy as jnp
from jax.experimental import pallas as pl
from jax.experimental.pallas import tpu as pltpu

BN_EPS = 1e-5


# ---------------------------------------------------------------------------
# Pass 1: conv-as-matmul (+ bias, ReLU) per M-tile, with per-tile partial
#         BatchNorm statistics (per-channel sum and sum-of-squares).
# ---------------------------------------------------------------------------
def _conv_relu_stats_kernel(cols_ref, w_ref, b_ref,
                            act_ref, sum_ref, ssq_ref,
                            *, tm, rows_valid):
    # cols_ref: (TM, Kp)    im2col rows for this tile (K zero-padded to Kp)
    # w_ref   : (Kp, C)     conv weight (constant block -> stays resident)
    # b_ref   : (1, C)      conv bias
    # act_ref : (TM, C)     conv + bias + ReLU output for this tile
    # sum_ref : (1, 1, C)   per-tile per-channel sum
    # ssq_ref : (1, 1, C)   per-tile per-channel sum of squares
    acc = jnp.dot(cols_ref[...], w_ref[...], preferred_element_type=jnp.float32)
    acc = acc + b_ref[...]                       # one (1,C) broadcast per tile
    acc = jnp.maximum(acc, jnp.float32(0.0))     # ReLU
    act_ref[...] = acc.astype(act_ref.dtype)

    if rows_valid is not None:
        # M was padded up to a multiple of TM: exclude padded rows from the
        # batch statistics (their value would be ReLU(bias), not data).
        row0 = pl.program_id(0) * tm
        rows = row0 + jax.lax.broadcasted_iota(jnp.int32, (tm, 1), 0)
        acc = jnp.where(rows < rows_valid, acc, jnp.float32(0.0))

    s = jnp.sum(acc, axis=0, keepdims=True)            # (1, C)
    sq = jnp.sum(acc * acc, axis=0, keepdims=True)     # (1, C)
    sum_ref[...] = s.reshape(1, 1, s.shape[-1])
    ssq_ref[...] = sq.reshape(1, 1, sq.shape[-1])


# ---------------------------------------------------------------------------
# Pass 2: lane-dense BatchNorm apply, y = act * scale + shift.
# ---------------------------------------------------------------------------
def _scale_shift_kernel(a_ref, scale_ref, shift_ref, o_ref):
    o_ref[...] = a_ref[...] * scale_ref[...] + shift_ref[...]


def _row_tile(rows, cap=1024):
    """Largest divisor of `rows` that is <= cap and sublane-aligned."""
    if rows <= cap:
        return rows
    for t in range(cap, 7, -1):
        if rows % t == 0 and t % 8 == 0:
            return t
    return rows  # full-extent block is always legal


@functools.partial(jax.jit, static_argnames=())
def conv_block_forward(x_ncdhw, weight, bias, gamma, beta):
    """x_ncdhw: (N, Cin, D, H, W); weight: (Cout, Cin, 3, 3, 3)."""
    N, Cin, D, H, W = x_ncdhw.shape
    Cout = weight.shape[0]

    # ---- glue: layout conversion + im2col (pure indexing/reshapes) --------
    x = jnp.transpose(x_ncdhw, (0, 2, 3, 4, 1))                   # NDHWC
    xp = jnp.pad(x, ((0, 0), (1, 1), (1, 1), (1, 1), (0, 0)))     # pad=1 spatial
    patches = []
    for kd in range(3):
        for kh in range(3):
            for kw in range(3):
                patches.append(xp[:, kd:kd + D, kh:kh + H, kw:kw + W, :])
    patches = jnp.stack(patches, axis=-2)                          # (N,D,H,W,27,Cin)

    M = N * D * H * W
    K = 27 * Cin
    Kp = ((K + 127) // 128) * 128          # lane-align the contraction dim

    # M-tile: big enough to amortize per-step overhead, capped so the
    # double-buffered cols tiles stay comfortably inside scoped VMEM
    # (re-derived per shape; safe for v7x's 64 MiB physical VMEM too).
    TM = 512
    while TM > 128 and 2 * TM * Kp * 4 > 8 * 1024 * 1024:
        TM //= 2
    M_pad = ((M + TM - 1) // TM) * TM
    num_tiles = M_pad // TM

    cols = patches.reshape(M, K).astype(jnp.float32)
    cols = jnp.pad(cols, ((0, M_pad - M), (0, Kp - K)))
    w2d = jnp.transpose(weight, (2, 3, 4, 1, 0)).reshape(K, Cout).astype(jnp.float32)
    w2d = jnp.pad(w2d, ((0, Kp - K), (0, 0)))
    b2d = bias.reshape(1, Cout).astype(jnp.float32)

    kernel_a = functools.partial(
        _conv_relu_stats_kernel, tm=TM,
        rows_valid=None if M_pad == M else M)

    cost_a = pl.CostEstimate(
        flops=2 * M_pad * Kp * Cout,
        transcendentals=0,
        bytes_accessed=4 * (M_pad * Kp + Kp * Cout + M_pad * Cout
                            + 2 * num_tiles * Cout))

    act, sums, ssqs = pl.pallas_call(
        kernel_a,
        grid=(num_tiles,),
        in_specs=[
            pl.BlockSpec((TM, Kp), lambda i: (i, 0)),       # cols tile (pipelined)
            pl.BlockSpec((Kp, Cout), lambda i: (0, 0)),     # weight (resident)
            pl.BlockSpec((1, Cout), lambda i: (0, 0)),      # bias   (resident)
        ],
        out_specs=(
            pl.BlockSpec((TM, Cout), lambda i: (i, 0)),
            pl.BlockSpec((1, 1, Cout), lambda i: (i, 0, 0)),
            pl.BlockSpec((1, 1, Cout), lambda i: (i, 0, 0)),
        ),
        out_shape=(
            jax.ShapeDtypeStruct((M_pad, Cout), jnp.float32),
            jax.ShapeDtypeStruct((num_tiles, 1, Cout), jnp.float32),
            jax.ShapeDtypeStruct((num_tiles, 1, Cout), jnp.float32),
        ),
        compiler_params=pltpu.CompilerParams(
            dimension_semantics=("parallel",),
            vmem_limit_bytes=32 * 1024 * 1024),
        cost_estimate=cost_a,
    )(cols, w2d, b2d)

    # ---- tiny glue: fold per-tile stats into per-channel scale/shift ------
    # (Biased variance, matching torch BatchNorm3d training normalization.)
    inv_m = jnp.float32(1.0 / M)
    tot_sum = jnp.sum(sums, axis=(0, 1))                 # (Cout,)
    tot_ssq = jnp.sum(ssqs, axis=(0, 1))                 # (Cout,)
    mean = tot_sum * inv_m
    var = tot_ssq * inv_m - mean * mean
    inv_std = jax.lax.rsqrt(var + jnp.float32(BN_EPS))
    scale = gamma.astype(jnp.float32) * inv_std          # (Cout,)
    shift = beta.astype(jnp.float32) - mean * scale      # (Cout,)

    # ---- pass 2: lane-dense normalize --------------------------------------
    if 128 % Cout == 0 and (M_pad * Cout) % 128 == 0:
        # Reinterpret (M_pad, Cout) as (rows, 128): free contiguous reshape.
        reps = 128 // Cout
        lanes = 128
        rows = (M_pad * Cout) // 128
        a2 = act.reshape(rows, lanes)
        scale_row = jnp.tile(scale, reps).reshape(1, lanes)
        shift_row = jnp.tile(shift, reps).reshape(1, lanes)
    else:
        lanes = Cout
        rows = M_pad
        a2 = act
        scale_row = scale.reshape(1, lanes)
        shift_row = shift.reshape(1, lanes)

    TB = _row_tile(rows)
    cost_b = pl.CostEstimate(
        flops=2 * rows * lanes, transcendentals=0,
        bytes_accessed=4 * (2 * rows * lanes + 2 * lanes))

    y2 = pl.pallas_call(
        _scale_shift_kernel,
        grid=(rows // TB,),
        in_specs=[
            pl.BlockSpec((TB, lanes), lambda i: (i, 0)),
            pl.BlockSpec((1, lanes), lambda i: (0, 0)),
            pl.BlockSpec((1, lanes), lambda i: (0, 0)),
        ],
        out_specs=pl.BlockSpec((TB, lanes), lambda i: (i, 0)),
        out_shape=jax.ShapeDtypeStruct((rows, lanes), jnp.float32),
        compiler_params=pltpu.CompilerParams(
            dimension_semantics=("parallel",),
            vmem_limit_bytes=32 * 1024 * 1024),
        cost_estimate=cost_b,
    )(a2, scale_row, shift_row)

    # back to PyTorch NCDHW
    y = y2.reshape(M_pad, Cout)[:M]
    out = y.reshape(N, D, H, W, Cout)
    return jnp.transpose(out, (0, 4, 1, 2, 3))


if __name__ == "__main__":
    key = jax.random.PRNGKey(0)
    kx, kw, kb = jax.random.split(key, 3)

    N, Cin, Cout = 2, 4, 8
    D = H = W = 8

    x = jax.random.normal(kx, (N, Cin, D, H, W), dtype=jnp.float32)

    # Deterministic parameter init (kaiming-uniform-like bound for Conv3d).
    fan_in = Cin * 27
    bound = 1.0 / jnp.sqrt(jnp.float32(fan_in))
    weight = jax.random.uniform(kw, (Cout, Cin, 3, 3, 3),
                                minval=-bound, maxval=bound, dtype=jnp.float32)
    bias = jax.random.uniform(kb, (Cout,), minval=-bound, maxval=bound,
                              dtype=jnp.float32)
    gamma = jnp.ones((Cout,), dtype=jnp.float32)   # BatchNorm3d default weight
    beta = jnp.zeros((Cout,), dtype=jnp.float32)   # BatchNorm3d default bias

    out = conv_block_forward(x, weight, bias, gamma, beta)
    jax.block_until_ready(out)

    # Sanity check against a pure-JAX reference of the same math.
    ref_conv = jax.lax.conv_general_dilated(
        x, weight, window_strides=(1, 1, 1), padding=((1, 1), (1, 1), (1, 1)),
        dimension_numbers=("NCDHW", "OIDHW", "NCDHW"),
    ) + bias.reshape(1, Cout, 1, 1, 1)
    ref = jnp.maximum(ref_conv, 0.0)
    mu = jnp.mean(ref, axis=(0, 2, 3, 4), keepdims=True)
    var = jnp.mean((ref - mu) ** 2, axis=(0, 2, 3, 4), keepdims=True)
    ref = (ref - mu) * jax.lax.rsqrt(var + BN_EPS) \
        * gamma.reshape(1, Cout, 1, 1, 1) + beta.reshape(1, Cout, 1, 1, 1)

    assert out.shape == (N, Cout, D, H, W)
    assert jnp.max(jnp.abs(out - ref)) < 1e-3

    print("KERNEL_OK")
</pallas_src>

<mosaic_0001>
module attributes {stable_mosaic.version = 11 : i64} {
  func.func @_conv_relu_stats_kernel(%arg0: i32, %arg1: memref<512x128xf32, #tpu.memory_space<vmem>>, %arg2: memref<128x8xf32, #tpu.memory_space<vmem>>, %arg3: memref<1x8xf32, #tpu.memory_space<vmem>>, %arg4: memref<512x8xf32, #tpu.memory_space<vmem>>, %arg5: memref<1x1x8xf32, #tpu.memory_space<vmem>>, %arg6: memref<1x1x8xf32, #tpu.memory_space<vmem>>) attributes {dimension_semantics = [#tpu.dimension_semantics<parallel>], iteration_bounds = array<i64: 2>, scalar_prefetch = 0 : i64, scratch_operands = 0 : i64, tpu.core_type = #tpu.core_type<tc>, window_params = [{transform_indices = @transform_0, window_bounds = array<i64: 512, 128>}, {pipeline_mode = #tpu.pipeline_mode<synchronous>, transform_indices = @transform_1, window_bounds = array<i64: 128, 8>}, {pipeline_mode = #tpu.pipeline_mode<synchronous>, transform_indices = @transform_2, window_bounds = array<i64: 1, 8>}, {transform_indices = @transform_3, window_bounds = array<i64: 512, 8>}, {transform_indices = @transform_4, window_bounds = array<i64: 1, 1, 8>}, {transform_indices = @transform_5, window_bounds = array<i64: 1, 1, 8>}]} {
    %c0 = arith.constant 0 : index
    %c0_0 = arith.constant 0 : index
    %0 = vector.load %arg1[%c0, %c0_0] : memref<512x128xf32, #tpu.memory_space<vmem>>, vector<512x128xf32>
    %c0_1 = arith.constant 0 : index
    %c0_2 = arith.constant 0 : index
    %1 = vector.load %arg2[%c0_1, %c0_2] : memref<128x8xf32, #tpu.memory_space<vmem>>, vector<128x8xf32>
    %cst = arith.constant dense<0.000000e+00> : vector<512x8xf32>
    %2 = tpu.matmul %0, %1, %cst {dimension_numbers = #tpu.dot_dimension_numbers<[1], [0], [0], [1], [0, 0, 1, 1], [], []>} : vector<512x128xf32>, vector<128x8xf32>, vector<512x8xf32> -> vector<512x8xf32>
    %c0_3 = arith.constant 0 : index
    %c0_4 = arith.constant 0 : index
    %3 = vector.load %arg3[%c0_3, %c0_4] : memref<1x8xf32, #tpu.memory_space<vmem>>, vector<1x8xf32>
    %4 = vector.broadcast %3 : vector<1x8xf32> to vector<512x8xf32>
    %5 = arith.addf %2, %4 : vector<512x8xf32>
    %cst_5 = arith.constant 0.000000e+00 : f32
    %6 = vector.broadcast %cst_5 : f32 to vector<512x8xf32>
    %7 = arith.maximumf %5, %6 : vector<512x8xf32>
    %c0_6 = arith.constant 0 : index
    %c0_7 = arith.constant 0 : index
    %8 = vector.load %arg4[%c0_6, %c0_7] : memref<512x8xf32, #tpu.memory_space<vmem>>, vector<512x8xf32>
    tpu.vector_store %arg4[%c0_6, %c0_7], %7 {strides = array<i32>} : memref<512x8xf32, #tpu.memory_space<vmem>>, vector<512x8xf32>,
    %cst_8 = arith.constant dense<0.000000e+00> : vector<8xf32>
    %9 = vector.multi_reduction <add>, %7, %cst_8 [0] : vector<512x8xf32> to vector<8xf32>
    %10 = vector.shape_cast %9 : vector<8xf32> to vector<1x8xf32>
    %11 = arith.mulf %7, %7 : vector<512x8xf32>
    %cst_9 = arith.constant dense<0.000000e+00> : vector<8xf32>
    %12 = vector.multi_reduction <add>, %11, %cst_9 [0] : vector<512x8xf32> to vector<8xf32>
    %13 = vector.shape_cast %12 : vector<8xf32> to vector<1x8xf32>
    %14 = vector.shape_cast %10 : vector<1x8xf32> to vector<1x1x8xf32>
    %c0_10 = arith.constant 0 : index
    %c0_11 = arith.constant 0 : index
    %c0_12 = arith.constant 0 : index
    %15 = vector.load %arg5[%c0_10, %c0_11, %c0_12] : memref<1x1x8xf32, #tpu.memory_space<vmem>>, vector<1x1x8xf32>
    tpu.vector_store %arg5[%c0_10, %c0_11, %c0_12], %14 {strides = array<i32>} : memref<1x1x8xf32, #tpu.memory_space<vmem>>, vector<1x1x8xf32>,
    %16 = vector.shape_cast %13 : vector<1x8xf32> to vector<1x1x8xf32>
    %c0_13 = arith.constant 0 : index
    %c0_14 = arith.constant 0 : index
    %c0_15 = arith.constant 0 : index
    %17 = vector.load %arg6[%c0_13, %c0_14, %c0_15] : memref<1x1x8xf32, #tpu.memory_space<vmem>>, vector<1x1x8xf32>
    tpu.vector_store %arg6[%c0_13, %c0_14, %c0_15], %16 {strides = array<i32>} : memref<1x1x8xf32, #tpu.memory_space<vmem>>, vector<1x1x8xf32>,
    return
  }
  func.func @transform_0(%arg0: i32) -> (i32, i32) {
    %c0_i32 = arith.constant 0 : i32
    %c0_i32_0 = arith.constant 0 : i32
    return %arg0, %c0_i32 : i32, i32
  }
  func.func @transform_1(%arg0: i32) -> (i32, i32) {
    %c0_i32 = arith.constant 0 : i32
    %c0_i32_0 = arith.constant 0 : i32
    %c0_i32_1 = arith.constant 0 : i32
    return %c0_i32, %c0_i32_0 : i32, i32
  }
  func.func @transform_2(%arg0: i32) -> (i32, i32) {
    %c0_i32 = arith.constant 0 : i32
    %c0_i32_0 = arith.constant 0 : i32
    %c0_i32_1 = arith.constant 0 : i32
    return %c0_i32, %c0_i32_0 : i32, i32
  }
  func.func @transform_3(%arg0: i32) -> (i32, i32) {
    %c0_i32 = arith.constant 0 : i32
    %c0_i32_0 = arith.constant 0 : i32
    return %arg0, %c0_i32 : i32, i32
  }
  func.func @transform_4(%arg0: i32) -> (i32, i32, i32) {
    %c0_i32 = arith.constant 0 : i32
    %c0_i32_0 = arith.constant 0 : i32
    %c0_i32_1 = arith.constant 0 : i32
    return %arg0, %c0_i32, %c0_i32_0 : i32, i32, i32
  }
  func.func @transform_5(%arg0: i32) -> (i32, i32, i32) {
    %c0_i32 = arith.constant 0 : i32
    %c0_i32_0 = arith.constant 0 : i32
    %c0_i32_1 = arith.constant 0 : i32
    return %arg0, %c0_i32, %c0_i32_0 : i32, i32, i32
  }
}

module attributes {stable_mosaic.version = 11 : i64} {
  func.func @_scale_shift_kernel(%arg0: i32, %arg1: memref<64x128xf32, #tpu.memory_space<vmem>>, %arg2: memref<1x128xf32, #tpu.memory_space<vmem>>, %arg3: memref<1x128xf32, #tpu.memory_space<vmem>>, %arg4: memref<64x128xf32, #tpu.memory_space<vmem>>) attributes {dimension_semantics = [#tpu.dimension_semantics<parallel>], iteration_bounds = array<i64: 1>, scalar_prefetch = 0 : i64, scratch_operands = 0 : i64, tpu.core_type = #tpu.core_type<tc>, window_params = [{transform_indices = @transform_0, window_bounds = array<i64: 64, 128>}, {pipeline_mode = #tpu.pipeline_mode<synchronous>, transform_indices = @transform_1, window_bounds = array<i64: 1, 128>}, {pipeline_mode = #tpu.pipeline_mode<synchronous>, transform_indices = @transform_2, window_bounds = array<i64: 1, 128>}, {transform_indices = @transform_3, window_bounds = array<i64: 64, 128>}]} {
    %c0 = arith.constant 0 : index
    %c0_0 = arith.constant 0 : index
    %0 = vector.load %arg1[%c0, %c0_0] : memref<64x128xf32, #tpu.memory_space<vmem>>, vector<64x128xf32>
    %c0_1 = arith.constant 0 : index
    %c0_2 = arith.constant 0 : index
    %1 = vector.load %arg2[%c0_1, %c0_2] : memref<1x128xf32, #tpu.memory_space<vmem>>, vector<1x128xf32>
    %2 = vector.broadcast %1 : vector<1x128xf32> to vector<64x128xf32>
    %3 = arith.mulf %0, %2 : vector<64x128xf32>
    %c0_3 = arith.constant 0 : index
    %c0_4 = arith.constant 0 : index
    %4 = vector.load %arg3[%c0_3, %c0_4] : memref<1x128xf32, #tpu.memory_space<vmem>>, vector<1x128xf32>
    %5 = vector.broadcast %4 : vector<1x128xf32> to vector<64x128xf32>
    %6 = arith.addf %3, %5 : vector<64x128xf32>
    %c0_5 = arith.constant 0 : index
    %c0_6 = arith.constant 0 : index
    %7 = vector.load %arg4[%c0_5, %c0_6] : memref<64x128xf32, #tpu.memory_space<vmem>>, vector<64x128xf32>
    tpu.vector_store %arg4[%c0_5, %c0_6], %6 {strides = array<i32>} : memref<64x128xf32, #tpu.memory_space<vmem>>, vector<64x128xf32>,
    return
  }
  func.func @transform_0(%arg0: i32) -> (i32, i32) {
    %c0_i32 = arith.constant 0 : i32
    %c0_i32_0 = arith.constant 0 : i32
    return %arg0, %c0_i32 : i32, i32
  }
  func.func @transform_1(%arg0: i32) -> (i32, i32) {
    %c0_i32 = arith.constant 0 : i32
    %c0_i32_0 = arith.constant 0 : i32
    %c0_i32_1 = arith.constant 0 : i32
    return %c0_i32, %c0_i32_0 : i32, i32
  }
  func.func @transform_2(%arg0: i32) -> (i32, i32) {
    %c0_i32 = arith.constant 0 : i32
    %c0_i32_0 = arith.constant 0 : i32
    %c0_i32_1 = arith.constant 0 : i32
    return %c0_i32, %c0_i32_0 : i32, i32
  }
  func.func @transform_3(%arg0: i32) -> (i32, i32) {
    %c0_i32 = arith.constant 0 : i32
    %c0_i32_0 = arith.constant 0 : i32
    return %arg0, %c0_i32 : i32, i32
  }
}

</mosaic_0001>

<llo_original>
// kernel: tile.13
$region0: #{tile.13}
  #allocation0 [shape = 's32[1]{0}', space=sflag, size = 0x4, scoped, tag = 'scoped memory for tile.13']
  %s0 = inlined_call_operand.vmem [shape: f32[8], index: 0, kind: input, shape index: {}]
  %s1 = inlined_call_operand.vmem [shape: f32[16,8], index: 1, kind: output, shape index: {}]
  // Predicated region
  $region2: #{tile.13} parent=0 // pred_check
    _
  $region3: #{tile.13} parent=0 // pred_check_branch
    %3 = sbr.rel (0) target = $region5
  $region4: #{tile.13} parent=0 // pred_region
    _
  $region5: #{tile.13} parent=0 // pred_fallthru
    _
  %v4 = vld [vmem:[%s0] ss:$0 sm:$0xff]
  %5 = vst [vmem:[%s1] sm:$0xff] %v4
  %s6 = scalar_lea.vmem %s1, 8
  %7 = vst [vmem:[%s6] sm:$0xff] %v4

// kernel: tile.14
$region0: #{tile.14}
  %s0 = inlined_call_operand.vmem [shape: f32[16,8], index: 0, kind: input, shape index: {}]
  %s1 = inlined_call_operand.vmem [shape: f32[1,128], index: 1, kind: output, shape index: {}]
  $region1: #{tile.14} parent=0
    #allocation0 [shape = 'u8[4096]{0}', space=vmem, size = 0x1000, scoped, tag = 'scoped mem for output reshape']
    %v2 = vld [vmem:[%s0] sm:$0x1]
    %vm3 = vcmask 64512
    %4 = vst.msk [vmem:[#allocation0] sm:$0x1] %vm3, %v2
    %s5 = scalar_lea.vmem %s0, 15
    %v6 = vld [vmem:[%s5] sm:$0x1]
    %7 = vrot.lane.b32.xlu0 %v6, 120
    %v8 = vpop.permute.xlu0 %7
    %vm9 = vcmask 1048512
    %10 = vst.msk [vmem:[#allocation0] sm:$0x1] %vm9, %v8
    %s11 = scalar_lea.vmem %s0, 14
    %v12 = vld [vmem:[%s11] sm:$0x1]
    %13 = vrot.lane.b32.xlu0 %v12, 112
    %v14 = vpop.permute.xlu0 %13
    %vm15 = vcmask 982912
    %16 = vst.msk [vmem:[#allocation0] sm:$0x1] %vm15, %v14
    %s17 = scalar_lea.vmem %s0, 13
    %v18 = vld [vmem:[%s17] sm:$0x1]
    %19 = vrot.lane.b32.xlu0 %v18, 104
    %v20 = vpop.permute.xlu0 %19
    %vm21 = vcmask 917312
    %22 = vst.msk [vmem:[#allocation0] sm:$0x1] %vm21, %v20
    %s23 = scalar_lea.vmem %s0, 12
    %v24 = vld [vmem:[%s23] sm:$0x1]
    %25 = vrot.lane.b32.xlu0 %v24, 96
    %v26 = vpop.permute.xlu0 %25
    %vm27 = vcmask 851712
    %28 = vst.msk [vmem:[#allocation0] sm:$0x1] %vm27, %v26
    %s29 = scalar_lea.vmem %s0, 11
    %v30 = vld [vmem:[%s29] sm:$0x1]
    %31 = vrot.lane.b32.xlu0 %v30, 88
    %v32 = vpop.permute.xlu0 %31
    %vm33 = vcmask 786112
    %34 = vst.msk [vmem:[#allocation0] sm:$0x1] %vm33, %v32
    %s35 = scalar_lea.vmem %s0, 10
    %v36 = vld [vmem:[%s35] sm:$0x1]
    %37 = vrot.lane.b32.xlu0 %v36, 80
    %v38 = vpop.permute.xlu0 %37
    %vm39 = vcmask 720512
    %40 = vst.msk [vmem:[#allocation0] sm:$0x1] %vm39, %v38
    %s41 = scalar_lea.vmem %s0, 9
    %v42 = vld [vmem:[%s41] sm:$0x1]
    %43 = vrot.lane.b32.xlu0 %v42, 72
    %v44 = vpop.permute.xlu0 %43
    %vm45 = vcmask 654912
    %46 = vst.msk [vmem:[#allocation0] sm:$0x1] %vm45, %v44
    %s47 = scalar_lea.vmem %s0, 8
    %v48 = vld [vmem:[%s47] sm:$0x1]
    %49 = vrot.lane.b32.xlu0 %v48, 64
    %v50 = vpop.permute.xlu0 %49
    %vm51 = vcmask 589312
    %52 = vst.msk [vmem:[#allocation0] sm:$0x1] %vm51, %v50
    %s53 = scalar_lea.vmem %s0, 7
    %v54 = vld [vmem:[%s53] sm:$0x1]
    %55 = vrot.lane.b32.xlu0 %v54, 56
    %v56 = vpop.permute.xlu0 %55
    %vm57 = vcmask 523712
    %58 = vst.msk [vmem:[#allocation0] sm:$0x1] %vm57, %v56
    %s59 = scalar_lea.vmem %s0, 6
    %v60 = vld [vmem:[%s59] sm:$0x1]
    %61 = vrot.lane.b32.xlu0 %v60, 48
    %v62 = vpop.permute.xlu0 %61
    %vm63 = vcmask 458112
    %64 = vst.msk [vmem:[#allocation0] sm:$0x1] %vm63, %v62
    %s65 = scalar_lea.vmem %s0, 5
    %v66 = vld [vmem:[%s65] sm:$0x1]
    %67 = vrot.lane.b32.xlu0 %v66, 40
    %v68 = vpop.permute.xlu0 %67
    %vm69 = vcmask 392512
    %70 = vst.msk [vmem:[#allocation0] sm:$0x1] %vm69, %v68
    %s71 = scalar_lea.vmem %s0, 4
    %v72 = vld [vmem:[%s71] sm:$0x1]
    %73 = vrot.lane.b32.xlu0 %v72, 32
    %v74 = vpop.permute.xlu0 %73
    %vm75 = vcmask 326912
    %76 = vst.msk [vmem:[#allocation0] sm:$0x1] %vm75, %v74
    %s77 = scalar_lea.vmem %s0, 3
    %v78 = vld [vmem:[%s77] sm:$0x1]
    %79 = vrot.lane.b32.xlu0 %v78, 24
    %v80 = vpop.permute.xlu0 %79
    %vm81 = vcmask 261312
    %82 = vst.msk [vmem:[#allocation0] sm:$0x1] %vm81, %v80
    %s83 = scalar_lea.vmem %s0, 2
    %v84 = vld [vmem:[%s83] sm:$0x1]
    %85 = vrot.lane.b32.xlu0 %v84, 16
    %v86 = vpop.permute.xlu0 %85
    %vm87 = vcmask 195712
    %88 = vst.msk [vmem:[#allocation0] sm:$0x1] %vm87, %v86
    %s89 = scalar_lea.vmem %s0, 1
    %v90 = vld [vmem:[%s89] sm:$0x1]
    %91 = vrot.lane.b32.xlu0 %v90, 8
    %v92 = vpop.permute.xlu0 %91
    %vm93 = vcmask 130112
    %94 = vst.msk [vmem:[#allocation0] sm:$0x1] %vm93, %v92
    %s96 = ssub.s32 2, 1
    %v97 = vld [vmem:[#allocation0] sm:%s96]
    %s99 = ssub.s32 2, 1
    %100 = vst [vmem:[%s1] sm:%s99] %v97

// kernel: conv_block_forward.2
$region0: #{conv_block_forward.2}
  #allocation0 [shape = 'u32[]', space=smem, size = 0x4, offset = 0x4, fixed_abs, tag = 'smem constant byte address 0x4 - core index']
  #allocation1 [shape = 'u32[72,128]{1,0:T(1,128)}', space=vmem, size = 0x9000, scoped, tag = 'internal scratch']
  %s0 = inlined_call_operand.vmem [shape: f32[1024,128], index: 0, kind: input, shape index: {}]
  %s1 = inlined_call_operand.vmem [shape: f32[128,8], index: 1, kind: input, shape index: {}]
  %s2 = inlined_call_operand.vmem [shape: f32[1,8], index: 2, kind: input, shape index: {}]
  %s3 = inlined_call_operand.vmem [shape: f32[1024,8], index: 3, kind: output, shape index: {0}]
  %s4 = inlined_call_operand.vmem [shape: f32[2,1,8], index: 4, kind: output, shape index: {1}]
  %s5 = inlined_call_operand.vmem [shape: f32[2,1,8], index: 5, kind: output, shape index: {2}]
  %6 = xla_tuple %s3, %s4, %s5
  %s7 = sld [smem:[#allocation0]]
  $region61: #{conv_block_forward.2} parent=0
    _
  %s9 = ssub.s32 1, %s7
  %s10 = scalar_select 0, %s9, %s7
  loop: start=0, step=1, limit=4
  $region2: #{conv_block_forward.2} parent=0 // loop_pre_header
    _
  $region3: #{conv_block_forward.2} parent=0 // loop_header
    %s12 = sphi 0, %s16
    %p13 = scmp.ge.s32.totalorder %s12, 4
    %s22 = sphi 0, %s24
    %s25 = sphi 0, %s22
    %s26 = sphi 0, %s25
    %s42 = sphi 0, %s26
    %s46 = sphi 0, %s46
    %s48 = sphi 0, %s46
    %s49 = sphi 0, %s48
    %s63 = sphi 0, %s49
    %s67 = sphi 0, %s67
    %s69 = sphi 0, %s67
    %s70 = sphi 0, %s69
    %s84 = sphi 0, %s70
    %s90 = sphi 0, %s92
    %s93 = sphi 0, %s90
    %s94 = sphi 0, %s93
    %s110 = sphi 0, %s94
    %s116 = sphi 0, %s118
    %s119 = sphi 0, %s116
    %s120 = sphi 0, %s119
    %s136 = sphi 0, %s120
    %s142 = sphi 0, %s144
    %s145 = sphi 0, %s142
    %s146 = sphi 0, %s145
    %s162 = sphi 0, %s146
  $region4: #{conv_block_forward.2} parent=0 // loop_header_branch
    %15 = sbr.rel (%p13) target = $region8
  $region5: #{conv_block_forward.2} parent=0 // loop_body
    %s17 = ssub.s32 %s12, 1
    %s18 = ssub.s32 %s12, 2
    %s19 = sadd.s32 %s12, 1
    %s20 = ssub.s32 %s12, %s19
    %p21 = scmp.eq.s32.totalorder %s20, 0
    %s23 = sadd.s32 %s22, 1
    %s24 = scalar_select %p21, %s22, %s23
    %p27 = pneg %p21
    %p28 = scmp.eq.s32.totalorder %s12, 1
    %p29 = por %p27, %p28
    %p30 = scmp.ne.s32.totalorder %s22, %s25
    %p31 = scmp.eq.s32.totalorder %s12, 0
    %p32 = por %p30, %p31
    %p33 = scmp.ne.s32.totalorder %s22, %s25
    %p34 = scmp.eq.s32.totalorder %s17, 1
    %p35 = por %p33, %p34
    %p36 = scmp.ne.s32.totalorder %s25, %s26
    %p37 = scmp.eq.s32.totalorder %s17, 0
    %p38 = por %p36, %p37
    %p39 = scmp.ne.s32.totalorder %s25, %s26
    %p40 = scmp.eq.s32.totalorder %s18, 1
    %p41 = por %p39, %p40
    %p43 = scmp.ne.s32.totalorder %s26, %s42
    %p44 = scmp.eq.s32.totalorder %s18, 0
    %p45 = por %p43, %p44
    %s47 = sadd.s32 %s46, 1
    %p50 = scmp.eq.s32.totalorder %s12, 1
    %p51 = scmp.ne.s32.totalorder %s46, %s48
    %p52 = scmp.eq.s32.totalorder %s12, 0
    %p53 = por %p51, %p52
    %p54 = scmp.ne.s32.totalorder %s46, %s48
    %p55 = scmp.eq.s32.totalorder %s17, 1
    %p56 = por %p54, %p55
    %p57 = scmp.ne.s32.totalorder %s48, %s49
    %p58 = scmp.eq.s32.totalorder %s17, 0
    %p59 = por %p57, %p58
    %p60 = scmp.ne.s32.totalorder %s48, %s49
    %p61 = scmp.eq.s32.totalorder %s18, 1
    %p62 = por %p60, %p61
    %p64 = scmp.ne.s32.totalorder %s49, %s63
    %p65 = scmp.eq.s32.totalorder %s18, 0
    %p66 = por %p64, %p65
    %s68 = sadd.s32 %s67, 1
    %p71 = scmp.eq.s32.totalorder %s12, 1
    %p72 = scmp.ne.s32.totalorder %s67, %s69
    %p73 = scmp.eq.s32.totalorder %s12, 0
    %p74 = por %p72, %p73
    %p75 = scmp.ne.s32.totalorder %s67, %s69
    %p76 = scmp.eq.s32.totalorder %s17, 1
    %p77 = por %p75, %p76
    %p78 = scmp.ne.s32.totalorder %s69, %s70
    %p79 = scmp.eq.s32.totalorder %s17, 0
    %p80 = por %p78, %p79
    %p81 = scmp.ne.s32.totalorder %s69, %s70
    %p82 = scmp.eq.s32.totalorder %s18, 1
    %p83 = por %p81, %p82
    %p85 = scmp.ne.s32.totalorder %s70, %s84
    %p86 = scmp.eq.s32.totalorder %s18, 0
    %p87 = por %p85, %p86
    %s88 = ssub.s32 %s12, %s19
    %p89 = scmp.eq.s32.totalorder %s88, 0
    %s91 = sadd.s32 %s90, 1
    %s92 = scalar_select %p89, %s90, %s91
    %p95 = pneg %p89
    %p96 = scmp.eq.s32.totalorder %s12, 1
    %p97 = por %p95, %p96
    %p98 = scmp.ne.s32.totalorder %s90, %s93
    %p99 = scmp.eq.s32.totalorder %s12, 0
    %p100 = por %p98, %p99
    %p101 = scmp.ne.s32.totalorder %s90, %s93
    %p102 = scmp.eq.s32.totalorder %s17, 1
    %p103 = por %p101, %p102
    %p104 = scmp.ne.s32.totalorder %s93, %s94
    %p105 = scmp.eq.s32.totalorder %s17, 0
    %p106 = por %p104, %p105
    %p107 = scmp.ne.s32.totalorder %s93, %s94
    %p108 = scmp.eq.s32.totalorder %s18, 1
    %p109 = por %p107, %p108
    %p111 = scmp.ne.s32.totalorder %s94, %s110
    %p112 = scmp.eq.s32.totalorder %s18, 0
    %p113 = por %p111, %p112
    %s114 = ssub.s32 %s12, %s19
    %p115 = scmp.eq.s32.totalorder %s114, 0
    %s117 = sadd.s32 %s116, 1
    %s118 = scalar_select %p115, %s116, %s117
    %p121 = pneg %p115
    %p122 = scmp.eq.s32.totalorder %s12, 1
    %p123 = por %p121, %p122
    %p124 = scmp.ne.s32.totalorder %s116, %s119
    %p125 = scmp.eq.s32.totalorder %s12, 0
    %p126 = por %p124, %p125
    %p127 = scmp.ne.s32.totalorder %s116, %s119
    %p128 = scmp.eq.s32.totalorder %s17, 1
    %p129 = por %p127, %p128
    %p130 = scmp.ne.s32.totalorder %s119, %s120
    %p131 = scmp.eq.s32.totalorder %s17, 0
    %p132 = por %p130, %p131
    %p133 = scmp.ne.s32.totalorder %s119, %s120
    %p134 = scmp.eq.s32.totalorder %s18, 1
    %p135 = por %p133, %p134
    %p137 = scmp.ne.s32.totalorder %s120, %s136
    %p138 = scmp.eq.s32.totalorder %s18, 0
    %p139 = por %p137, %p138
    %s140 = ssub.s32 %s12, %s19
    %p141 = scmp.eq.s32.totalorder %s140, 0
    %s143 = sadd.s32 %s142, 1
    %s144 = scalar_select %p141, %s142, %s143
    %p147 = pneg %p141
    %p148 = scmp.eq.s32.totalorder %s12, 1
    %p149 = por %p147, %p148
    %p150 = scmp.ne.s32.totalorder %s142, %s145
    %p151 = scmp.eq.s32.totalorder %s12, 0
    %p152 = por %p150, %p151
    %p153 = scmp.ne.s32.totalorder %s142, %s145
    %p154 = scmp.eq.s32.totalorder %s17, 1
    %p155 = por %p153, %p154
    %p156 = scmp.ne.s32.totalorder %s145, %s146
    %p157 = scmp.eq.s32.totalorder %s17, 0
    %p158 = por %p156, %p157
    %p159 = scmp.ne.s32.totalorder %s145, %s146
    %p160 = scmp.eq.s32.totalorder %s18, 1
    %p161 = por %p159, %p160
    %p163 = scmp.ne.s32.totalorder %s146, %s162
    %p164 = scmp.eq.s32.totalorder %s18, 0
    %p165 = por %p163, %p164
    %p166 = scmp.le.s32.totalorder 1, %s12
    %p167 = scmp.lt.s32.totalorder %s12, 3
    %p168 = pnand %p166, %p167
    %p169 = pneg %p168
    // Predicated region
    $region9: #{conv_block_forward.2} parent=5 // pred_check
      _
    $region10: #{conv_block_forward.2} parent=5 // pred_check_branch
      %171 = sbr.rel (%p168) target = $region12
    $region11: #{conv_block_forward.2} parent=5 // pred_region
      %s172 = ssub.s32 %s12, 1
      // Predicated region
      $region13: #{conv_block_forward.2} parent=11 // pred_check
        %p173 = pneg %p59
      $region14: #{conv_block_forward.2} parent=11 // pred_check_branch
        %175 = sbr.rel (%p173) target = $region16
      $region15: #{conv_block_forward.2} parent=11 // pred_region
        _
      $region16: #{conv_block_forward.2} parent=11 // pred_fallthru
        _
      // Predicated region
      $region17: #{conv_block_forward.2} parent=11 // pred_check
        %p176 = pneg %p80
      $region18: #{conv_block_forward.2} parent=11 // pred_check_branch
        %178 = sbr.rel (%p176) target = $region20
      $region19: #{conv_block_forward.2} parent=11 // pred_region
        _
      $region20: #{conv_block_forward.2} parent=11 // pred_fallthru
        _
    $region12: #{conv_block_forward.2} parent=5 // pred_fallthru
      _
    %p179 = scmp.lt.s32.totalorder %s12, 2
    // Predicated region
    $region21: #{conv_block_forward.2} parent=5 // pred_check
      %p180 = pneg %p179
    $region22: #{conv_block_forward.2} parent=5 // pred_check_branch
      %182 = sbr.rel (%p180) target = $region24
    $region23: #{conv_block_forward.2} parent=5 // pred_region
      // Predicated region
      $region25: #{conv_block_forward.2} parent=23 // pred_check
        %p183 = pneg %p32
      $region26: #{conv_block_forward.2} parent=23 // pred_check_branch
        %185 = sbr.rel (%p183) target = $region28
      $region27: #{conv_block_forward.2} parent=23 // pred_region
        %s186 = smul.u32 64, %s12
        %p187 = scmp.lt.s32.totalorder %s186, 127
        %s188 = scalar_select %p187, %s186, 127
        %s189 = smul.addr %s188, 8
        %s190 = scalar_lea.vmem %s0, %s189
        %s191 = smul.u32 64, %s12
      $region28: #{conv_block_forward.2} parent=23 // pred_fallthru
        _
    $region24: #{conv_block_forward.2} parent=5 // pred_fallthru
      _
    %p192 = scmp.le.s32.totalorder 1, %s12
    %p193 = scmp.lt.s32.totalorder %s12, 3
    %p194 = pnand %p192, %p193
    %p195 = pneg %p194
    // Predicated region
    $region29: #{conv_block_forward.2} parent=5 // pred_check
      _
    $region30: #{conv_block_forward.2} parent=5 // pred_check_branch
      %197 = sbr.rel (%p194) target = $region32
    $region31: #{conv_block_forward.2} parent=5 // pred_region
      %s198 = ssub.s32 %s12, 1
      %s199 = smul.u32 64, %s17
      %p200 = scmp.lt.s32.totalorder %s199, 127
      %s201 = scalar_select %p200, %s199, 127
      %s202 = smul.addr %s201, 8
      %s203 = scalar_lea.vmem %s0, %s202
      %p204 = pneg %p38
      %p205 = pneg %p35
      %p206 = pneg %p59
      %p207 = pneg %p56
      %p208 = pneg %p80
      %p209 = pneg %p77
      %p210 = pneg %p106
      %p211 = pneg %p103
      %s212 = smul.u32 64, %s17
      %p213 = scmp.lt.s32.totalorder %s212, 127
      %s214 = scalar_select %p213, %s212, 127
      %s215 = smul.addr %s214, 8
      %s216 = scalar_lea.vmem %s3, %s215
      %p217 = pneg %p132
      %p218 = pneg %p129
      %p219 = scmp.lt.s32.totalorder %s17, 1
      %s220 = scalar_select %p219, %s17, 1
      %s221 = scalar_lea.vmem %s4, %s220
      %p222 = pneg %p158
      %p223 = pneg %p155
      %p224 = scmp.lt.s32.totalorder %s17, 1
      %s225 = scalar_select %p224, %s17, 1
      %s226 = scalar_lea.vmem %s5, %s225
      %s227 = smul.u32 64, %s17
      %p228 = scmp.lt.s32.totalorder %s227, 127
      %s229 = scalar_select %p228, %s227, 127
      %s230 = smul.addr %s229, 8
      %s231 = scalar_lea.vmem %s0, %s230
      %s232 = smul.u32 64, %s17
      %s233 = smul.u32 64, %s17
      %p234 = scmp.lt.s32.totalorder %s233, 127
      %s235 = scalar_select %p234, %s233, 127
      %s236 = smul.addr %s235, 8
      %s237 = scalar_lea.vmem %s3, %s236
      %s238 = smul.u32 64, %s17
      %p239 = scmp.lt.s32.totalorder %s17, 1
      %s240 = scalar_select %p239, %s17, 1
      %s241 = scalar_lea.vmem %s4, %s240
      %p242 = scmp.lt.s32.totalorder %s17, 1
      %s243 = scalar_select %p242, %s17, 1
      %s244 = scalar_lea.vmem %s5, %s243
      %v245 = vld [vmem:[%s231] sm:$0xff]
      %v246 = vld [vmem:[%s231 + $0x8] sm:$0xff]
      %v247 = vld [vmem:[%s231 + $0x10] sm:$0xff]
      %v248 = vld [vmem:[%s231 + $0x18] sm:$0xff]
      %v249 = vld [vmem:[%s231 + $0x20] sm:$0xff]
      %v250 = vld [vmem:[%s231 + $0x28] sm:$0xff]
      %v251 = vld [vmem:[%s231 + $0x30] sm:$0xff]
      %v252 = vld [vmem:[%s231 + $0x38] sm:$0xff]
      %v253 = vld [vmem:[%s231 + $0x40] sm:$0xff]
      %v254 = vld [vmem:[%s231 + $0x48] sm:$0xff]
      %v255 = vld [vmem:[%s231 + $0x50] sm:$0xff]
      %v256 = vld [vmem:[%s231 + $0x58] sm:$0xff]
      %v257 = vld [vmem:[%s231 + $0x60] sm:$0xff]
      %v258 = vld [vmem:[%s231 + $0x68] sm:$0xff]
      %v259 = vld [vmem:[%s231 + $0x70] sm:$0xff]
      %v260 = vld [vmem:[%s231 + $0x78] sm:$0xff]
      %v261 = vld [vmem:[%s231 + $0x80] sm:$0xff]
      %v262 = vld [vmem:[%s231 + $0x88] sm:$0xff]
      %v263 = vld [vmem:[%s231 + $0x90] sm:$0xff]
      %v264 = vld [vmem:[%s231 + $0x98] sm:$0xff]
      %v265 = vld [vmem:[%s231 + $0xa0] sm:$0xff]
      %v266 = vld [vmem:[%s231 + $0xa8] sm:$0xff]
      %v267 = vld [vmem:[%s231 + $0xb0] sm:$0xff]
      %v268 = vld [vmem:[%s231 + $0xb8] sm:$0xff]
      %v269 = vld [vmem:[%s231 + $0xc0] sm:$0xff]
      %v270 = vld [vmem:[%s231 + $0xc8] sm:$0xff]
      %v271 = vld [vmem:[%s231 + $0xd0] sm:$0xff]
      %v272 = vld [vmem:[%s231 + $0xd8] sm:$0xff]
      %v273 = vld [vmem:[%s231 + $0xe0] sm:$0xff]
      %v274 = vld [vmem:[%s231 + $0xe8] sm:$0xff]
      %v275 = vld [vmem:[%s231 + $0xf0] sm:$0xff]
      %v276 = vld [vmem:[%s231 + $0xf8] sm:$0xff]
      %v277 = vld [vmem:[%s231 + $0x100] sm:$0xff]
      %v278 = vld [vmem:[%s231 + $0x108] sm:$0xff]
      %v279 = vld [vmem:[%s231 + $0x110] sm:$0xff]
      %v280 = vld [vmem:[%s231 + $0x118] sm:$0xff]
      %v281 = vld [vmem:[%s231 + $0x120] sm:$0xff]
      %v282 = vld [vmem:[%s231 + $0x128] sm:$0xff]
      %v283 = vld [vmem:[%s231 + $0x130] sm:$0xff]
      %v284 = vld [vmem:[%s231 + $0x138] sm:$0xff]
      %v285 = vld [vmem:[%s231 + $0x140] sm:$0xff]
      %v286 = vld [vmem:[%s231 + $0x148] sm:$0xff]
      %v287 = vld [vmem:[%s231 + $0x150] sm:$0xff]
      %v288 = vld [vmem:[%s231 + $0x158] sm:$0xff]
      %v289 = vld [vmem:[%s231 + $0x160] sm:$0xff]
      %v290 = vld [vmem:[%s231 + $0x168] sm:$0xff]
      %v291 = vld [vmem:[%s231 + $0x170] sm:$0xff]
      %v292 = vld [vmem:[%s231 + $0x178] sm:$0xff]
      %v293 = vld [vmem:[%s231 + $0x180] sm:$0xff]
      %v294 = vld [vmem:[%s231 + $0x188] sm:$0xff]
      %v295 = vld [vmem:[%s231 + $0x190] sm:$0xff]
      %v296 = vld [vmem:[%s231 + $0x198] sm:$0xff]
      %v297 = vld [vmem:[%s231 + $0x1a0] sm:$0xff]
      %v298 = vld [vmem:[%s231 + $0x1a8] sm:$0xff]
      %v299 = vld [vmem:[%s231 + $0x1b0] sm:$0xff]
      %v300 = vld [vmem:[%s231 + $0x1b8] sm:$0xff]
      %v301 = vld [vmem:[%s231 + $0x1c0] sm:$0xff]
      %v302 = vld [vmem:[%s231 + $0x1c8] sm:$0xff]
      %v303 = vld [vmem:[%s231 + $0x1d0] sm:$0xff]
      %v304 = vld [vmem:[%s231 + $0x1d8] sm:$0xff]
      %v305 = vld [vmem:[%s231 + $0x1e0] sm:$0xff]
      %v306 = vld [vmem:[%s231 + $0x1e8] sm:$0xff]
      %v307 = vld [vmem:[%s231 + $0x1f0] sm:$0xff]
      %v308 = vld [vmem:[%s231 + $0x1f8] sm:$0xff]
      %v309 = vld [vmem:[%s1] sm:$0xff]
      %v310 = vld [vmem:[%s1 + $0x8] sm:$0xff]
      %v311 = vld [vmem:[%s1 + $0x10] sm:$0xff]
      %v312 = vld [vmem:[%s1 + $0x18] sm:$0xff]
      %v313 = vld [vmem:[%s1 + $0x20] sm:$0xff]
      %v314 = vld [vmem:[%s1 + $0x28] sm:$0xff]
      %v315 = vld [vmem:[%s1 + $0x30] sm:$0xff]
      %v316 = vld [vmem:[%s1 + $0x38] sm:$0xff]
      %v317 = vld [vmem:[%s1 + $0x40] sm:$0xff]
      %v318 = vld [vmem:[%s1 + $0x48] sm:$0xff]
      %v319 = vld [vmem:[%s1 + $0x50] sm:$0xff]
      %v320 = vld [vmem:[%s1 + $0x58] sm:$0xff]
      %v321 = vld [vmem:[%s1 + $0x60] sm:$0xff]
      %v322 = vld [vmem:[%s1 + $0x68] sm:$0xff]
      %v323 = vld [vmem:[%s1 + $0x70] sm:$0xff]
      %v324 = vld [vmem:[%s1 + $0x78] sm:$0xff]
      %v325 = vld [vmem:[%s2] sm:$0x1]
      %v327 = vperm.slane %v325, 0
      %329 = vmatpush.msra.mxu0 %v324
      %330 = vmatpush.msra.mxu0 %v323
      %331 = vmatpush.msra.mxu0 %v322
      %332 = vmatpush.msra.mxu0 %v321
      %333 = vmatpush.msra.mxu0 %v320
      %334 = vmatpush.msra.mxu0 %v319
      %335 = vmatpush.msra.mxu0 %v318
      %336 = vmatpush.msra.mxu0 %v317
      %337 = vmatpush.msra.mxu0 %v316
      %338 = vmatpush.msra.mxu0 %v315
      %339 = vmatpush.msra.mxu0 %v314
      %340 = vmatpush.msra.mxu0 %v313
      %341 = vmatpush.msra.mxu0 %v312
      %342 = vmatpush.msra.mxu0 %v311
      %343 = vmatpush.msra.mxu0 %v310
      %344 = vmatpush.msra.mxu0 %v309
      %345 = vmatmul.f32.gmra.mxu0 %v245
      %v346 = vpop.f32.mrf.mxu0
      %v347 = vadd.f32 %v327, %v346
      %348 = vmatmul.f32.gmra.mxu0 %v246
      %v349 = vpop.f32.mrf.mxu0
      %v350 = vadd.f32 %v327, %v349
      %351 = vmatmul.f32.gmra.mxu0 %v247
      %v352 = vpop.f32.mrf.mxu0
      %v353 = vadd.f32 %v327, %v352
      %354 = vmatmul.f32.gmra.mxu0 %v248
      %v355 = vpop.f32.mrf.mxu0
      %v356 = vadd.f32 %v327, %v355
      %357 = vmatmul.f32.gmra.mxu0 %v249
      %v358 = vpop.f32.mrf.mxu0
      %v359 = vadd.f32 %v327, %v358
      %360 = vmatmul.f32.gmra.mxu0 %v250
      %v361 = vpop.f32.mrf.mxu0
      %v362 = vadd.f32 %v327, %v361
      %363 = vmatmul.f32.gmra.mxu0 %v251
      %v364 = vpop.f32.mrf.mxu0
      %v365 = vadd.f32 %v327, %v364
      %366 = vmatmul.f32.gmra.mxu0 %v252
      %v367 = vpop.f32.mrf.mxu0
      %v368 = vadd.f32 %v327, %v367
      %369 = vmatmul.f32.gmra.mxu0 %v253
      %v370 = vpop.f32.mrf.mxu0
      %v371 = vadd.f32 %v327, %v370
      %372 = vmatmul.f32.gmra.mxu0 %v254
      %v373 = vpop.f32.mrf.mxu0
      %v374 = vadd.f32 %v327, %v373
      %375 = vmatmul.f32.gmra.mxu0 %v255
      %v376 = vpop.f32.mrf.mxu0
      %v377 = vadd.f32 %v327, %v376
      %378 = vmatmul.f32.gmra.mxu0 %v256
      %v379 = vpop.f32.mrf.mxu0
      %v380 = vadd.f32 %v327, %v379
      %381 = vmatmul.f32.gmra.mxu0 %v257
      %v382 = vpop.f32.mrf.mxu0
      %v383 = vadd.f32 %v327, %v382
      %384 = vmatmul.f32.gmra.mxu0 %v258
      %v385 = vpop.f32.mrf.mxu0
      %v386 = vadd.f32 %v327, %v385
      %387 = vmatmul.f32.gmra.mxu0 %v259
      %v388 = vpop.f32.mrf.mxu0
      %v389 = vadd.f32 %v327, %v388
      %390 = vmatmul.f32.gmra.mxu0 %v260
      %v391 = vpop.f32.mrf.mxu0
      %v392 = vadd.f32 %v327, %v391
      %393 = vmatmul.f32.gmra.mxu0 %v261
      %v394 = vpop.f32.mrf.mxu0
      %v395 = vadd.f32 %v327, %v394
      %396 = vmatmul.f32.gmra.mxu0 %v262
      %v397 = vpop.f32.mrf.mxu0
      %v398 = vadd.f32 %v327, %v397
      %399 = vmatmul.f32.gmra.mxu0 %v263
      %v400 = vpop.f32.mrf.mxu0
      %v401 = vadd.f32 %v327, %v400
      %402 = vmatmul.f32.gmra.mxu0 %v264
      %v403 = vpop.f32.mrf.mxu0
      %v404 = vadd.f32 %v327, %v403
      %405 = vmatmul.f32.gmra.mxu0 %v265
      %v406 = vpop.f32.mrf.mxu0
      %v407 = vadd.f32 %v327, %v406
      %408 = vmatmul.f32.gmra.mxu0 %v266
      %v409 = vpop.f32.mrf.mxu0
      %v410 = vadd.f32 %v327, %v409
      %411 = vmatmul.f32.gmra.mxu0 %v267
      %v412 = vpop.f32.mrf.mxu0
      %v413 = vadd.f32 %v327, %v412
      %414 = vmatmul.f32.gmra.mxu0 %v268
      %v415 = vpop.f32.mrf.mxu0
      %v416 = vadd.f32 %v327, %v415
      %417 = vmatmul.f32.gmra.mxu0 %v269
      %v418 = vpop.f32.mrf.mxu0
      %v419 = vadd.f32 %v327, %v418
      %420 = vmatmul.f32.gmra.mxu0 %v270
      %v421 = vpop.f32.mrf.mxu0
      %v422 = vadd.f32 %v327, %v421
      %423 = vmatmul.f32.gmra.mxu0 %v271
      %v424 = vpop.f32.mrf.mxu0
      %v425 = vadd.f32 %v327, %v424
      %426 = vmatmul.f32.gmra.mxu0 %v272
      %v427 = vpop.f32.mrf.mxu0
      %v428 = vadd.f32 %v327, %v427
      %429 = vmatmul.f32.gmra.mxu0 %v273
      %v430 = vpop.f32.mrf.mxu0
      %v431 = vadd.f32 %v327, %v430
      %432 = vmatmul.f32.gmra.mxu0 %v274
      %v433 = vpop.f32.mrf.mxu0
      %v434 = vadd.f32 %v327, %v433
      %435 = vmatmul.f32.gmra.mxu0 %v275
      %v436 = vpop.f32.mrf.mxu0
      %v437 = vadd.f32 %v327, %v436
      %438 = vmatmul.f32.gmra.mxu0 %v276
      %v439 = vpop.f32.mrf.mxu0
      %v440 = vadd.f32 %v327, %v439
      %441 = vmatmul.f32.gmra.mxu0 %v277
      %v442 = vpop.f32.mrf.mxu0
      %v443 = vadd.f32 %v327, %v442
      %444 = vmatmul.f32.gmra.mxu0 %v278
      %v445 = vpop.f32.mrf.mxu0
      %v446 = vadd.f32 %v327, %v445
      %447 = vmatmul.f32.gmra.mxu0 %v279
      %v448 = vpop.f32.mrf.mxu0
      %v449 = vadd.f32 %v327, %v448
      %450 = vmatmul.f32.gmra.mxu0 %v280
      %v451 = vpop.f32.mrf.mxu0
      %v452 = vadd.f32 %v327, %v451
      %453 = vmatmul.f32.gmra.mxu0 %v281
      %v454 = vpop.f32.mrf.mxu0
      %v455 = vadd.f32 %v327, %v454
      %456 = vmatmul.f32.gmra.mxu0 %v282
      %v457 = vpop.f32.mrf.mxu0
      %v458 = vadd.f32 %v327, %v457
      %459 = vmatmul.f32.gmra.mxu0 %v283
      %v460 = vpop.f32.mrf.mxu0
      %v461 = vadd.f32 %v327, %v460
      %462 = vmatmul.f32.gmra.mxu0 %v284
      %v463 = vpop.f32.mrf.mxu0
      %v464 = vadd.f32 %v327, %v463
      %465 = vmatmul.f32.gmra.mxu0 %v285
      %v466 = vpop.f32.mrf.mxu0
      %v467 = vadd.f32 %v327, %v466
      %468 = vmatmul.f32.gmra.mxu0 %v286
      %v469 = vpop.f32.mrf.mxu0
      %v470 = vadd.f32 %v327, %v469
      %471 = vmatmul.f32.gmra.mxu0 %v287
      %v472 = vpop.f32.mrf.mxu0
      %v473 = vadd.f32 %v327, %v472
      %474 = vmatmul.f32.gmra.mxu0 %v288
      %v475 = vpop.f32.mrf.mxu0
      %v476 = vadd.f32 %v327, %v475
      %477 = vmatmul.f32.gmra.mxu0 %v289
      %v478 = vpop.f32.mrf.mxu0
      %v479 = vadd.f32 %v327, %v478
      %480 = vmatmul.f32.gmra.mxu0 %v290
      %v481 = vpop.f32.mrf.mxu0
      %v482 = vadd.f32 %v327, %v481
      %483 = vmatmul.f32.gmra.mxu0 %v291
      %v484 = vpop.f32.mrf.mxu0
      %v485 = vadd.f32 %v327, %v484
      %486 = vmatmul.f32.gmra.mxu0 %v292
      %v487 = vpop.f32.mrf.mxu0
      %v488 = vadd.f32 %v327, %v487
      %489 = vmatmul.f32.gmra.mxu0 %v293
      %v490 = vpop.f32.mrf.mxu0
      %v491 = vadd.f32 %v327, %v490
      %492 = vmatmul.f32.gmra.mxu0 %v294
      %v493 = vpop.f32.mrf.mxu0
      %v494 = vadd.f32 %v327, %v493
      %495 = vmatmul.f32.gmra.mxu0 %v295
      %v496 = vpop.f32.mrf.mxu0
      %v497 = vadd.f32 %v327, %v496
      %498 = vmatmul.f32.gmra.mxu0 %v296
      %v499 = vpop.f32.mrf.mxu0
      %v500 = vadd.f32 %v327, %v499
      %501 = vmatmul.f32.gmra.mxu0 %v297
      %v502 = vpop.f32.mrf.mxu0
      %v503 = vadd.f32 %v327, %v502
      %504 = vmatmul.f32.gmra.mxu0 %v298
      %v505 = vpop.f32.mrf.mxu0
      %v506 = vadd.f32 %v327, %v505
      %507 = vmatmul.f32.gmra.mxu0 %v299
      %v508 = vpop.f32.mrf.mxu0
      %v509 = vadd.f32 %v327, %v508
      %510 = vmatmul.f32.gmra.mxu0 %v300
      %v511 = vpop.f32.mrf.mxu0
      %v512 = vadd.f32 %v327, %v511
      %513 = vmatmul.f32.gmra.mxu0 %v301
      %v514 = vpop.f32.mrf.mxu0
      %v515 = vadd.f32 %v327, %v514
      %516 = vmatmul.f32.gmra.mxu0 %v302
      %v517 = vpop.f32.mrf.mxu0
      %v518 = vadd.f32 %v327, %v517
      %519 = vmatmul.f32.gmra.mxu0 %v303
      %v520 = vpop.f32.mrf.mxu0
      %v521 = vadd.f32 %v327, %v520
      %522 = vmatmul.f32.gmra.mxu0 %v304
      %v523 = vpop.f32.mrf.mxu0
      %v524 = vadd.f32 %v327, %v523
      %525 = vmatmul.f32.gmra.mxu0 %v305
      %v526 = vpop.f32.mrf.mxu0
      %v527 = vadd.f32 %v327, %v526
      %528 = vmatmul.f32.gmra.mxu0 %v306
      %v529 = vpop.f32.mrf.mxu0
      %v530 = vadd.f32 %v327, %v529
      %531 = vmatmul.f32.gmra.mxu0 %v307
      %v532 = vpop.f32.mrf.mxu0
      %v533 = vadd.f32 %v327, %v532
      %534 = vmatmul.f32.gmra.mxu0 %v308
      %v535 = vpop.f32.mrf.mxu0
      %v536 = vadd.f32 %v327, %v535
      %537 = vdwg.mxu0
      %v538 = vmax.f32 %v347, 0.0
      %v539 = vmax.f32 %v350, 0.0
      %v540 = vmax.f32 %v353, 0.0
      %v541 = vmax.f32 %v356, 0.0
      %v542 = vmax.f32 %v359, 0.0
      %v543 = vmax.f32 %v362, 0.0
      %v544 = vmax.f32 %v365, 0.0
      %v545 = vmax.f32 %v368, 0.0
      %v546 = vmax.f32 %v371, 0.0
      %v547 = vmax.f32 %v374, 0.0
      %v548 = vmax.f32 %v377, 0.0
      %v549 = vmax.f32 %v380, 0.0
      %v550 = vmax.f32 %v383, 0.0
      %v551 = vmax.f32 %v386, 0.0
      %v552 = vmax.f32 %v389, 0.0
      %v553 = vmax.f32 %v392, 0.0
      %v554 = vmax.f32 %v395, 0.0
      %v555 = vmax.f32 %v398, 0.0
      %v556 = vmax.f32 %v401, 0.0
      %v557 = vmax.f32 %v404, 0.0
      %v558 = vmax.f32 %v407, 0.0
      %v559 = vmax.f32 %v410, 0.0
      %v560 = vmax.f32 %v413, 0.0
      %v561 = vmax.f32 %v416, 0.0
      %v562 = vmax.f32 %v419, 0.0
      %v563 = vmax.f32 %v422, 0.0
      %v564 = vmax.f32 %v425, 0.0
      %v565 = vmax.f32 %v428, 0.0
      %v566 = vmax.f32 %v431, 0.0
      %v567 = vmax.f32 %v434, 0.0
      %v568 = vmax.f32 %v437, 0.0
      %v569 = vmax.f32 %v440, 0.0
      %v570 = vmax.f32 %v443, 0.0
      %v571 = vmax.f32 %v446, 0.0
      %v572 = vmax.f32 %v449, 0.0
      %v573 = vmax.f32 %v452, 0.0
      %v574 = vmax.f32 %v455, 0.0
      %v575 = vmax.f32 %v458, 0.0
      %v576 = vmax.f32 %v461, 0.0
      %v577 = vmax.f32 %v464, 0.0
      %v578 = vmax.f32 %v467, 0.0
      %v579 = vmax.f32 %v470, 0.0
      %v580 = vmax.f32 %v473, 0.0
      %v581 = vmax.f32 %v476, 0.0
      %v582 = vmax.f32 %v479, 0.0
      %v583 = vmax.f32 %v482, 0.0
      %v584 = vmax.f32 %v485, 0.0
      %v585 = vmax.f32 %v488, 0.0
      %v586 = vmax.f32 %v491, 0.0
      %v587 = vmax.f32 %v494, 0.0
      %v588 = vmax.f32 %v497, 0.0
      %v589 = vmax.f32 %v500, 0.0
      %v590 = vmax.f32 %v503, 0.0
      %v591 = vmax.f32 %v506, 0.0
      %v592 = vmax.f32 %v509, 0.0
      %v593 = vmax.f32 %v512, 0.0
      %v594 = vmax.f32 %v515, 0.0
      %v595 = vmax.f32 %v518, 0.0
      %v596 = vmax.f32 %v521, 0.0
      %v597 = vmax.f32 %v524, 0.0
      %v598 = vmax.f32 %v527, 0.0
      %v599 = vmax.f32 %v530, 0.0
      %v600 = vmax.f32 %v533, 0.0
      %v601 = vmax.f32 %v536, 0.0
      %vm602 = vcmask 64512
      %603 = vst.msk [vmem:[%s237] sm:$0xff] %vm602, %v538
      %604 = vst.msk [vmem:[%s237 + $0x8] sm:$0xff] %vm602, %v539
      %605 = vst.msk [vmem:[%s237 + $0x10] sm:$0xff] %vm602, %v540
      %606 = vst.msk [vmem:[%s237 + $0x18] sm:$0xff] %vm602, %v541
      %607 = vst.msk [vmem:[%s237 + $0x20] sm:$0xff] %vm602, %v542
      %608 = vst.msk [vmem:[%s237 + $0x28] sm:$0xff] %vm602, %v543
      %609 = vst.msk [vmem:[%s237 + $0x30] sm:$0xff] %vm602, %v544
      %610 = vst.msk [vmem:[%s237 + $0x38] sm:$0xff] %vm602, %v545
      %611 = vst.msk [vmem:[%s237 + $0x40] sm:$0xff] %vm602, %v546
      %612 = vst.msk [vmem:[%s237 + $0x48] sm:$0xff] %vm602, %v547
      %613 = vst.msk [vmem:[%s237 + $0x50] sm:$0xff] %vm602, %v548
      %614 = vst.msk [vmem:[%s237 + $0x58] sm:$0xff] %vm602, %v549
      %615 = vst.msk [vmem:[%s237 + $0x60] sm:$0xff] %vm602, %v550
      %616 = vst.msk [vmem:[%s237 + $0x68] sm:$0xff] %vm602, %v551
      %617 = vst.msk [vmem:[%s237 + $0x70] sm:$0xff] %vm602, %v552
      %618 = vst.msk [vmem:[%s237 + $0x78] sm:$0xff] %vm602, %v553
      %619 = vst.msk [vmem:[%s237 + $0x80] sm:$0xff] %vm602, %v554
      %620 = vst.msk [vmem:[%s237 + $0x88] sm:$0xff] %vm602, %v555
      %621 = vst.msk [vmem:[%s237 + $0x90] sm:$0xff] %vm602, %v556
      %622 = vst.msk [vmem:[%s237 + $0x98] sm:$0xff] %vm602, %v557
      %623 = vst.msk [vmem:[%s237 + $0xa0] sm:$0xff] %vm602, %v558
      %624 = vst.msk [vmem:[%s237 + $0xa8] sm:$0xff] %vm602, %v559
      %625 = vst.msk [vmem:[%s237 + $0xb0] sm:$0xff] %vm602, %v560
      %626 = vst.msk [vmem:[%s237 + $0xb8] sm:$0xff] %vm602, %v561
      %627 = vst.msk [vmem:[%s237 + $0xc0] sm:$0xff] %vm602, %v562
      %628 = vst.msk [vmem:[%s237 + $0xc8] sm:$0xff] %vm602, %v563
      %629 = vst.msk [vmem:[%s237 + $0xd0] sm:$0xff] %vm602, %v564
      %630 = vst.msk [vmem:[%s237 + $0xd8] sm:$0xff] %vm602, %v565
      %631 = vst.msk [vmem:[%s237 + $0xe0] sm:$0xff] %vm602, %v566
      %632 = vst.msk [vmem:[%s237 + $0xe8] sm:$0xff] %vm602, %v567
      %633 = vst.msk [vmem:[%s237 + $0xf0] sm:$0xff] %vm602, %v568
      %634 = vst.msk [vmem:[%s237 + $0xf8] sm:$0xff] %vm602, %v569
      %635 = vst.msk [vmem:[%s237 + $0x100] sm:$0xff] %vm602, %v570
      %636 = vst.msk [vmem:[%s237 + $0x108] sm:$0xff] %vm602, %v571
      %637 = vst.msk [vmem:[%s237 + $0x110] sm:$0xff] %vm602, %v572
      %638 = vst.msk [vmem:[%s237 + $0x118] sm:$0xff] %vm602, %v573
      %639 = vst.msk [vmem:[%s237 + $0x120] sm:$0xff] %vm602, %v574
      %640 = vst.msk [vmem:[%s237 + $0x128] sm:$0xff] %vm602, %v575
      %641 = vst.msk [vmem:[%s237 + $0x130] sm:$0xff] %vm602, %v576
      %642 = vst.msk [vmem:[%s237 + $0x138] sm:$0xff] %vm602, %v577
      %643 = vst.msk [vmem:[%s237 + $0x140] sm:$0xff] %vm602, %v578
      %644 = vst.msk [vmem:[%s237 + $0x148] sm:$0xff] %vm602, %v579
      %645 = vst.msk [vmem:[%s237 + $0x150] sm:$0xff] %vm602, %v580
      %646 = vst.msk [vmem:[%s237 + $0x158] sm:$0xff] %vm602, %v581
      %647 = vst.msk [vmem:[%s237 + $0x160] sm:$0xff] %vm602, %v582
      %648 = vst.msk [vmem:[%s237 + $0x168] sm:$0xff] %vm602, %v583
      %649 = vst.msk [vmem:[%s237 + $0x170] sm:$0xff] %vm602, %v584
      %650 = vst.msk [vmem:[%s237 + $0x178] sm:$0xff] %vm602, %v585
      %651 = vst.msk [vmem:[%s237 + $0x180] sm:$0xff] %vm602, %v586
      %652 = vst.msk [vmem:[%s237 + $0x188] sm:$0xff] %vm602, %v587
      %653 = vst.msk [vmem:[%s237 + $0x190] sm:$0xff] %vm602, %v588
      %654 = vst.msk [vmem:[%s237 + $0x198] sm:$0xff] %vm602, %v589
      %655 = vst.msk [vmem:[%s237 + $0x1a0] sm:$0xff] %vm602, %v590
      %656 = vst.msk [vmem:[%s237 + $0x1a8] sm:$0xff] %vm602, %v591
      %657 = vst.msk [vmem:[%s237 + $0x1b0] sm:$0xff] %vm602, %v592
      %658 = vst.msk [vmem:[%s237 + $0x1b8] sm:$0xff] %vm602, %v593
      %659 = vst.msk [vmem:[%s237 + $0x1c0] sm:$0xff] %vm602, %v594
      %660 = vst.msk [vmem:[%s237 + $0x1c8] sm:$0xff] %vm602, %v595
      %661 = vst.msk [vmem:[%s237 + $0x1d0] sm:$0xff] %vm602, %v596
      %662 = vst.msk [vmem:[%s237 + $0x1d8] sm:$0xff] %vm602, %v597
      %663 = vst.msk [vmem:[%s237 + $0x1e0] sm:$0xff] %vm602, %v598
      %664 = vst.msk [vmem:[%s237 + $0x1e8] sm:$0xff] %vm602, %v599
      %665 = vst.msk [vmem:[%s237 + $0x1f0] sm:$0xff] %vm602, %v600
      %666 = vst.msk [vmem:[%s237 + $0x1f8] sm:$0xff] %vm602, %v601
      %v667 = vsel %vm602, %v538, 0.0
      %v668 = vsel %vm602, %v539, 0.0
      %v669 = vadd.f32 %v667, %v668
      %v670 = vsel %vm602, %v540, 0.0
      %v671 = vadd.f32 %v669, %v670
      %v672 = vsel %vm602, %v541, 0.0
      %v673 = vadd.f32 %v671, %v672
      %v674 = vsel %vm602, %v542, 0.0
      %v675 = vadd.f32 %v673, %v674
      %v676 = vsel %vm602, %v543, 0.0
      %v677 = vadd.f32 %v675, %v676
      %v678 = vsel %vm602, %v544, 0.0
      %v679 = vadd.f32 %v677, %v678
      %v680 = vsel %vm602, %v545, 0.0
      %v681 = vadd.f32 %v679, %v680
      %v682 = vsel %vm602, %v546, 0.0
      %v683 = vadd.f32 %v681, %v682
      %v684 = vsel %vm602, %v547, 0.0
      %v685 = vadd.f32 %v683, %v684
      %v686 = vsel %vm602, %v548, 0.0
      %v687 = vadd.f32 %v685, %v686
      %v688 = vsel %vm602, %v549, 0.0
      %v689 = vadd.f32 %v687, %v688
      %v690 = vsel %vm602, %v550, 0.0
      %v691 = vadd.f32 %v689, %v690
      %v692 = vsel %vm602, %v551, 0.0
      %v693 = vadd.f32 %v691, %v692
      %v694 = vsel %vm602, %v552, 0.0
      %v695 = vadd.f32 %v693, %v694
      %v696 = vsel %vm602, %v553, 0.0
      %v697 = vadd.f32 %v695, %v696
      %v698 = vsel %vm602, %v554, 0.0
      %v699 = vadd.f32 %v697, %v698
      %v700 = vsel %vm602, %v555, 0.0
      %v701 = vadd.f32 %v699, %v700
      %v702 = vsel %vm602, %v556, 0.0
      %v703 = vadd.f32 %v701, %v702
      %v704 = vsel %vm602, %v557, 0.0
      %v705 = vadd.f32 %v703, %v704
      %v706 = vsel %vm602, %v558, 0.0
      %v707 = vadd.f32 %v705, %v706
      %v708 = vsel %vm602, %v559, 0.0
      %v709 = vadd.f32 %v707, %v708
      %v710 = vsel %vm602, %v560, 0.0
      %v711 = vadd.f32 %v709, %v710
      %v712 = vsel %vm602, %v561, 0.0
      %v713 = vadd.f32 %v711, %v712
      %v714 = vsel %vm602, %v562, 0.0
      %v715 = vadd.f32 %v713, %v714
      %v716 = vsel %vm602, %v563, 0.0
      %v717 = vadd.f32 %v715, %v716
      %v718 = vsel %vm602, %v564, 0.0
      %v719 = vadd.f32 %v717, %v718
      %v720 = vsel %vm602, %v565, 0.0
      %v721 = vadd.f32 %v719, %v720
      %v722 = vsel %vm602, %v566, 0.0
      %v723 = vadd.f32 %v721, %v722
      %v724 = vsel %vm602, %v567, 0.0
      %v725 = vadd.f32 %v723, %v724
      %v726 = vsel %vm602, %v568, 0.0
      %v727 = vadd.f32 %v725, %v726
      %v728 = vsel %vm602, %v569, 0.0
      %v729 = vadd.f32 %v727, %v728
      %v730 = vsel %vm602, %v570, 0.0
      %v731 = vadd.f32 %v729, %v730
      %v732 = vsel %vm602, %v571, 0.0
      %v733 = vadd.f32 %v731, %v732
      %v734 = vsel %vm602, %v572, 0.0
      %v735 = vadd.f32 %v733, %v734
      %v736 = vsel %vm602, %v573, 0.0
      %v737 = vadd.f32 %v735, %v736
      %v738 = vsel %vm602, %v574, 0.0
      %v739 = vadd.f32 %v737, %v738
      %v740 = vsel %vm602, %v575, 0.0
      %v741 = vadd.f32 %v739, %v740
      %v742 = vsel %vm602, %v576, 0.0
      %v743 = vadd.f32 %v741, %v742
      %v744 = vsel %vm602, %v577, 0.0
      %v745 = vadd.f32 %v743, %v744
      %v746 = vsel %vm602, %v578, 0.0
      %v747 = vadd.f32 %v745, %v746
      %v748 = vsel %vm602, %v579, 0.0
      %v749 = vadd.f32 %v747, %v748
      %v750 = vsel %vm602, %v580, 0.0
      %v751 = vadd.f32 %v749, %v750
      %v752 = vsel %vm602, %v581, 0.0
      %v753 = vadd.f32 %v751, %v752
      %v754 = vsel %vm602, %v582, 0.0
      %v755 = vadd.f32 %v753, %v754
      %v756 = vsel %vm602, %v583, 0.0
      %v757 = vadd.f32 %v755, %v756
      %v758 = vsel %vm602, %v584, 0.0
      %v759 = vadd.f32 %v757, %v758
      %v760 = vsel %vm602, %v585, 0.0
      %v761 = vadd.f32 %v759, %v760
      %v762 = vsel %vm602, %v586, 0.0
      %v763 = vadd.f32 %v761, %v762
      %v764 = vsel %vm602, %v587, 0.0
      %v765 = vadd.f32 %v763, %v764
      %v766 = vsel %vm602, %v588, 0.0
      %v767 = vadd.f32 %v765, %v766
      %v768 = vsel %vm602, %v589, 0.0
      %v769 = vadd.f32 %v767, %v768
      %v770 = vsel %vm602, %v590, 0.0
      %v771 = vadd.f32 %v769, %v770
      %v772 = vsel %vm602, %v591, 0.0
      %v773 = vadd.f32 %v771, %v772
      %v774 = vsel %vm602, %v592, 0.0
      %v775 = vadd.f32 %v773, %v774
      %v776 = vsel %vm602, %v593, 0.0
      %v777 = vadd.f32 %v775, %v776
      %v778 = vsel %vm602, %v594, 0.0
      %v779 = vadd.f32 %v777, %v778
      %v780 = vsel %vm602, %v595, 0.0
      %v781 = vadd.f32 %v779, %v780
      %v782 = vsel %vm602, %v596, 0.0
      %v783 = vadd.f32 %v781, %v782
      %v784 = vsel %vm602, %v597, 0.0
      %v785 = vadd.f32 %v783, %v784
      %v786 = vsel %vm602, %v598, 0.0
      %v787 = vadd.f32 %v785, %v786
      %v788 = vsel %vm602, %v599, 0.0
      %v789 = vadd.f32 %v787, %v788
      %v790 = vsel %vm602, %v600, 0.0
      %v791 = vadd.f32 %v789, %v790
      %v792 = vsel %vm602, %v601, 0.0
      %v793 = vadd.f32 %v791, %v792
      %v794 = vrot.slane %v793, 4
      %v795 = vadd.f32 %v793, %v794
      %v796 = vrot.slane %v795, 2
      %v797 = vadd.f32 %v795, %v796
      %v798 = vrot.slane %v797, 1
      %v799 = vadd.f32 %v797, %v798
      %v800 = vmul.f32 %v538, %v538
      %v801 = vmul.f32 %v539, %v539
      %v802 = vmul.f32 %v540, %v540
      %v803 = vmul.f32 %v541, %v541
      %v804 = vmul.f32 %v542, %v542
      %v805 = vmul.f32 %v543, %v543
      %v806 = vmul.f32 %v544, %v544
      %v807 = vmul.f32 %v545, %v545
      %v808 = vmul.f32 %v546, %v546
      %v809 = vmul.f32 %v547, %v547
      %v810 = vmul.f32 %v548, %v548
      %v811 = vmul.f32 %v549, %v549
      %v812 = vmul.f32 %v550, %v550
      %v813 = vmul.f32 %v551, %v551
      %v814 = vmul.f32 %v552, %v552
      %v815 = vmul.f32 %v553, %v553
      %v816 = vmul.f32 %v554, %v554
      %v817 = vmul.f32 %v555, %v555
      %v818 = vmul.f32 %v556, %v556
      %v819 = vmul.f32 %v557, %v557
      %v820 = vmul.f32 %v558, %v558
      %v821 = vmul.f32 %v559, %v559
      %v822 = vmul.f32 %v560, %v560
      %v823 = vmul.f32 %v561, %v561
      %v824 = vmul.f32 %v562, %v562
      %v825 = vmul.f32 %v563, %v563
      %v826 = vmul.f32 %v564, %v564
      %v827 = vmul.f32 %v565, %v565
      %v828 = vmul.f32 %v566, %v566
      %v829 = vmul.f32 %v567, %v567
      %v830 = vmul.f32 %v568, %v568
      %v831 = vmul.f32 %v569, %v569
      %v832 = vmul.f32 %v570, %v570
      %v833 = vmul.f32 %v571, %v571
      %v834 = vmul.f32 %v572, %v572
      %v835 = vmul.f32 %v573, %v573
      %v836 = vmul.f32 %v574, %v574
      %v837 = vmul.f32 %v575, %v575
      %v838 = vmul.f32 %v576, %v576
      %v839 = vmul.f32 %v577, %v577
      %v840 = vmul.f32 %v578, %v578
      %v841 = vmul.f32 %v579, %v579
      %v842 = vmul.f32 %v580, %v580
      %v843 = vmul.f32 %v581, %v581
      %v844 = vmul.f32 %v582, %v582
      %v845 = vmul.f32 %v583, %v583
      %v846 = vmul.f32 %v584, %v584
      %v847 = vmul.f32 %v585, %v585
      %v848 = vmul.f32 %v586, %v586
      %v849 = vmul.f32 %v587, %v587
      %v850 = vmul.f32 %v588, %v588
      %v851 = vmul.f32 %v589, %v589
      %v852 = vmul.f32 %v590, %v590
      %v853 = vmul.f32 %v591, %v591
      %v854 = vmul.f32 %v592, %v592
      %v855 = vmul.f32 %v593, %v593
      %v856 = vmul.f32 %v594, %v594
      %v857 = vmul.f32 %v595, %v595
      %v858 = vmul.f32 %v596, %v596
      %v859 = vmul.f32 %v597, %v597
      %v860 = vmul.f32 %v598, %v598
      %v861 = vmul.f32 %v599, %v599
      %v862 = vmul.f32 %v600, %v600
      %v863 = vmul.f32 %v601, %v601
      %v864 = vsel %vm602, %v800, 0.0
      %v865 = vsel %vm602, %v801, 0.0
      %v866 = vadd.f32 %v864, %v865
      %v867 = vsel %vm602, %v802, 0.0
      %v868 = vadd.f32 %v866, %v867
      %v869 = vsel %vm602, %v803, 0.0
      %v870 = vadd.f32 %v868, %v869
      %v871 = vsel %vm602, %v804, 0.0
      %v872 = vadd.f32 %v870, %v871
      %v873 = vsel %vm602, %v805, 0.0
      %v874 = vadd.f32 %v872, %v873
      %v875 = vsel %vm602, %v806, 0.0
      %v876 = vadd.f32 %v874, %v875
      %v877 = vsel %vm602, %v807, 0.0
      %v878 = vadd.f32 %v876, %v877
      %v879 = vsel %vm602, %v808, 0.0
      %v880 = vadd.f32 %v878, %v879
      %v881 = vsel %vm602, %v809, 0.0
      %v882 = vadd.f32 %v880, %v881
      %v883 = vsel %vm602, %v810, 0.0
      %v884 = vadd.f32 %v882, %v883
      %v885 = vsel %vm602, %v811, 0.0
      %v886 = vadd.f32 %v884, %v885
      %v887 = vsel %vm602, %v812, 0.0
      %v888 = vadd.f32 %v886, %v887
      %v889 = vsel %vm602, %v813, 0.0
      %v890 = vadd.f32 %v888, %v889
      %v891 = vsel %vm602, %v814, 0.0
      %v892 = vadd.f32 %v890, %v891
      %v893 = vsel %vm602, %v815, 0.0
      %v894 = vadd.f32 %v892, %v893
      %v895 = vsel %vm602, %v816, 0.0
      %v896 = vadd.f32 %v894, %v895
      %v897 = vsel %vm602, %v817, 0.0
      %v898 = vadd.f32 %v896, %v897
      %v899 = vsel %vm602, %v818, 0.0
      %v900 = vadd.f32 %v898, %v899
      %v901 = vsel %vm602, %v819, 0.0
      %v902 = vadd.f32 %v900, %v901
      %v903 = vsel %vm602, %v820, 0.0
      %v904 = vadd.f32 %v902, %v903
      %v905 = vsel %vm602, %v821, 0.0
      %v906 = vadd.f32 %v904, %v905
      %v907 = vsel %vm602, %v822, 0.0
      %v908 = vadd.f32 %v906, %v907
      %v909 = vsel %vm602, %v823, 0.0
      %v910 = vadd.f32 %v908, %v909
      %v911 = vsel %vm602, %v824, 0.0
      %v912 = vadd.f32 %v910, %v911
      %v913 = vsel %vm602, %v825, 0.0
      %v914 = vadd.f32 %v912, %v913
      %v915 = vsel %vm602, %v826, 0.0
      %v916 = vadd.f32 %v914, %v915
      %v917 = vsel %vm602, %v827, 0.0
      %v918 = vadd.f32 %v916, %v917
      %v919 = vsel %vm602, %v828, 0.0
      %v920 = vadd.f32 %v918, %v919
      %v921 = vsel %vm602, %v829, 0.0
      %v922 = vadd.f32 %v920, %v921
      %v923 = vsel %vm602, %v830, 0.0
      %v924 = vadd.f32 %v922, %v923
      %v925 = vsel %vm602, %v831, 0.0
      %v926 = vadd.f32 %v924, %v925
      %v927 = vsel %vm602, %v832, 0.0
      %v928 = vadd.f32 %v926, %v927
      %v929 = vsel %vm602, %v833, 0.0
      %v930 = vadd.f32 %v928, %v929
      %v931 = vsel %vm602, %v834, 0.0
      %v932 = vadd.f32 %v930, %v931
      %v933 = vsel %vm602, %v835, 0.0
      %v934 = vadd.f32 %v932, %v933
      %v935 = vsel %vm602, %v836, 0.0
      %v936 = vadd.f32 %v934, %v935
      %v937 = vsel %vm602, %v837, 0.0
      %v938 = vadd.f32 %v936, %v937
      %v939 = vsel %vm602, %v838, 0.0
      %v940 = vadd.f32 %v938, %v939
      %v941 = vsel %vm602, %v839, 0.0
      %v942 = vadd.f32 %v940, %v941
      %v943 = vsel %vm602, %v840, 0.0
      %v944 = vadd.f32 %v942, %v943
      %v945 = vsel %vm602, %v841, 0.0
      %v946 = vadd.f32 %v944, %v945
      %v947 = vsel %vm602, %v842, 0.0
      %v948 = vadd.f32 %v946, %v947
      %v949 = vsel %vm602, %v843, 0.0
      %v950 = vadd.f32 %v948, %v949
      %v951 = vsel %vm602, %v844, 0.0
      %v952 = vadd.f32 %v950, %v951
      %v953 = vsel %vm602, %v845, 0.0
      %v954 = vadd.f32 %v952, %v953
      %v955 = vsel %vm602, %v846, 0.0
      %v956 = vadd.f32 %v954, %v955
      %v957 = vsel %vm602, %v847, 0.0
      %v958 = vadd.f32 %v956, %v957
      %v959 = vsel %vm602, %v848, 0.0
      %v960 = vadd.f32 %v958, %v959
      %v961 = vsel %vm602, %v849, 0.0
      %v962 = vadd.f32 %v960, %v961
      %v963 = vsel %vm602, %v850, 0.0
      %v964 = vadd.f32 %v962, %v963
      %v965 = vsel %vm602, %v851, 0.0
      %v966 = vadd.f32 %v964, %v965
      %v967 = vsel %vm602, %v852, 0.0
      %v968 = vadd.f32 %v966, %v967
      %v969 = vsel %vm602, %v853, 0.0
      %v970 = vadd.f32 %v968, %v969
      %v971 = vsel %vm602, %v854, 0.0
      %v972 = vadd.f32 %v970, %v971
      %v973 = vsel %vm602, %v855, 0.0
      %v974 = vadd.f32 %v972, %v973
      %v975 = vsel %vm602, %v856, 0.0
      %v976 = vadd.f32 %v974, %v975
      %v977 = vsel %vm602, %v857, 0.0
      %v978 = vadd.f32 %v976, %v977
      %v979 = vsel %vm602, %v858, 0.0
      %v980 = vadd.f32 %v978, %v979
      %v981 = vsel %vm602, %v859, 0.0
      %v982 = vadd.f32 %v980, %v981
      %v983 = vsel %vm602, %v860, 0.0
      %v984 = vadd.f32 %v982, %v983
      %v985 = vsel %vm602, %v861, 0.0
      %v986 = vadd.f32 %v984, %v985
      %v987 = vsel %vm602, %v862, 0.0
      %v988 = vadd.f32 %v986, %v987
      %v989 = vsel %vm602, %v863, 0.0
      %v990 = vadd.f32 %v988, %v989
      %v991 = vrot.slane %v990, 4
      %v992 = vadd.f32 %v990, %v991
      %v993 = vrot.slane %v992, 2
      %v994 = vadd.f32 %v992, %v993
      %v995 = vrot.slane %v994, 1
      %v996 = vadd.f32 %v994, %v995
      %vm997 = vcmask 57344
      %998 = vst.msk [vmem:[%s241] sm:$0x1] %vm997, %v799
      %999 = vst.msk [vmem:[%s244] sm:$0x1] %vm997, %v996
      %s1000 = smul.u32 64, %s17
      %p1001 = scmp.lt.s32.totalorder %s1000, 127
      %s1002 = scalar_select %p1001, %s1000, 127
      %s1003 = smul.addr %s1002, 8
      %s1004 = scalar_lea.vmem %s3, %s1003
      %p1005 = scmp.lt.s32.totalorder %s17, 1
      %s1006 = scalar_select %p1005, %s17, 1
      %s1007 = scalar_lea.vmem %s4, %s1006
      %p1008 = scmp.lt.s32.totalorder %s17, 1
      %s1009 = scalar_select %p1008, %s17, 1
      %s1010 = scalar_lea.vmem %s5, %s1009
      // Predicated region
      $region33: #{conv_block_forward.2} parent=31 // pred_check
        %p1011 = pneg %p103
      $region34: #{conv_block_forward.2} parent=31 // pred_check_branch
        %1013 = sbr.rel (%p1011) target = $region36
      $region35: #{conv_block_forward.2} parent=31 // pred_region
        %s1014 = smul.u32 64, %s17
      $region36: #{conv_block_forward.2} parent=31 // pred_fallthru
        _
      // Predicated region
      $region37: #{conv_block_forward.2} parent=31 // pred_check
        %p1015 = pneg %p129
      $region38: #{conv_block_forward.2} parent=31 // pred_check_branch
        %1017 = sbr.rel (%p1015) target = $region40
      $region39: #{conv_block_forward.2} parent=31 // pred_region
        _
      $region40: #{conv_block_forward.2} parent=31 // pred_fallthru
        _
      // Predicated region
      $region41: #{conv_block_forward.2} parent=31 // pred_check
        %p1018 = pneg %p155
      $region42: #{conv_block_forward.2} parent=31 // pred_check_branch
        %1020 = sbr.rel (%p1018) target = $region44
      $region43: #{conv_block_forward.2} parent=31 // pred_region
        _
      $region44: #{conv_block_forward.2} parent=31 // pred_fallthru
        _
    $region32: #{conv_block_forward.2} parent=5 // pred_fallthru
      _
    %p1021 = scmp.le.s32.totalorder 2, %s12
    // Predicated region
    $region45: #{conv_block_forward.2} parent=5 // pred_check
      %p1022 = pneg %p1021
    $region46: #{conv_block_forward.2} parent=5 // pred_check_branch
      %1024 = sbr.rel (%p1022) target = $region48
    $region47: #{conv_block_forward.2} parent=5 // pred_region
      %s1025 = ssub.s32 %s12, 2
      // Predicated region
      $region49: #{conv_block_forward.2} parent=47 // pred_check
        %p1026 = pneg %p109
      $region50: #{conv_block_forward.2} parent=47 // pred_check_branch
        %1028 = sbr.rel (%p1026) target = $region52
      $region51: #{conv_block_forward.2} parent=47 // pred_region
        %s1029 = smul.u32 64, %s18
        %p1030 = scmp.lt.s32.totalorder %s1029, 127
        %s1031 = scalar_select %p1030, %s1029, 127
        %s1032 = smul.addr %s1031, 8
        %s1033 = scalar_lea.vmem %s3, %s1032
      $region52: #{conv_block_forward.2} parent=47 // pred_fallthru
        _
      // Predicated region
      $region53: #{conv_block_forward.2} parent=47 // pred_check
        %p1034 = pneg %p135
      $region54: #{conv_block_forward.2} parent=47 // pred_check_branch
        %1036 = sbr.rel (%p1034) target = $region56
      $region55: #{conv_block_forward.2} parent=47 // pred_region
        %p1037 = scmp.lt.s32.totalorder %s18, 1
        %s1038 = scalar_select %p1037, %s18, 1
        %s1039 = scalar_lea.vmem %s4, %s1038
      $region56: #{conv_block_forward.2} parent=47 // pred_fallthru
        _
      // Predicated region
      $region57: #{conv_block_forward.2} parent=47 // pred_check
        %p1040 = pneg %p161
      $region58: #{conv_block_forward.2} parent=47 // pred_check_branch
        %1042 = sbr.rel (%p1040) target = $region60
      $region59: #{conv_block_forward.2} parent=47 // pred_region
        %p1043 = scmp.lt.s32.totalorder %s18, 1
        %s1044 = scalar_select %p1043, %s18, 1
        %s1045 = scalar_lea.vmem %s5, %s1044
      $region60: #{conv_block_forward.2} parent=47 // pred_fallthru
        _
    $region48: #{conv_block_forward.2} parent=5 // pred_fallthru
      _
  $region6: #{conv_block_forward.2} parent=0 // loop_footer
    %s16 = sadd.s32 1, %s12
  $region7: #{conv_block_forward.2} parent=0 // loop_footer_branch
    %11 = sbr.rel target = $region3
  $region8: #{conv_block_forward.2} parent=0 // loop_exit
    _

// kernel: conv_block_forward.3
$region0: #{conv_block_forward.3}
  #allocation0 [shape = 'u32[]', space=smem, size = 0x4, offset = 0x4, fixed_abs, tag = 'smem constant byte address 0x4 - core index']
  #allocation1 [shape = 'u32[72,128]{1,0:T(1,128)}', space=vmem, size = 0x9000, scoped, tag = 'internal scratch']
  %s0 = inlined_call_operand.vmem [shape: f32[64,128], index: 0, kind: input, shape index: {}]
  %s1 = inlined_call_operand.vmem [shape: f32[1,128], index: 1, kind: input, shape index: {}]
  %s2 = inlined_call_operand.vmem [shape: f32[1,128], index: 2, kind: input, shape index: {}]
  %s3 = inlined_call_operand.vmem [shape: f32[64,128], index: 3, kind: output, shape index: {}]
  %s4 = sld [smem:[#allocation0]]
  $region22: #{conv_block_forward.3} parent=0
    _
  %s6 = ssub.s32 1, %s4
  %s7 = scalar_select 0, %s6, %s4
  // Predicated region
  $region2: #{conv_block_forward.3} parent=0 // pred_check
    _
  $region3: #{conv_block_forward.3} parent=0 // pred_check_branch
    %9 = sbr.rel (0) target = $region5
  $region4: #{conv_block_forward.3} parent=0 // pred_region
    _
  $region5: #{conv_block_forward.3} parent=0 // pred_fallthru
    _
  // Predicated region
  $region6: #{conv_block_forward.3} parent=0 // pred_check
    _
  $region7: #{conv_block_forward.3} parent=0 // pred_check_branch
    %11 = sbr.rel (0) target = $region9
  $region8: #{conv_block_forward.3} parent=0 // pred_region
    _
  $region9: #{conv_block_forward.3} parent=0 // pred_fallthru
    _
  // Predicated region
  $region10: #{conv_block_forward.3} parent=0 // pred_check
    _
  $region11: #{conv_block_forward.3} parent=0 // pred_check_branch
    %13 = sbr.rel (0) target = $region13
  $region12: #{conv_block_forward.3} parent=0 // pred_region
    _
  $region13: #{conv_block_forward.3} parent=0 // pred_fallthru
    _
  %v14 = vld [vmem:[%s0] sm:$0xff]
  %v15 = vld [vmem:[%s0 + $0x8] sm:$0xff]
  %v16 = vld [vmem:[%s0 + $0x10] sm:$0xff]
  %v17 = vld [vmem:[%s0 + $0x18] sm:$0xff]
  %v18 = vld [vmem:[%s0 + $0x20] sm:$0xff]
  %v19 = vld [vmem:[%s0 + $0x28] sm:$0xff]
  %v20 = vld [vmem:[%s0 + $0x30] sm:$0xff]
  %v21 = vld [vmem:[%s0 + $0x38] sm:$0xff]
  %v22 = vld [vmem:[%s1] sm:$0x1]
  %v24 = vperm.slane %v22, 0
  %v26 = vmul.f32 %v14, %v24
  %v27 = vmul.f32 %v15, %v24
  %v28 = vmul.f32 %v16, %v24
  %v29 = vmul.f32 %v17, %v24
  %v30 = vmul.f32 %v18, %v24
  %v31 = vmul.f32 %v19, %v24
  %v32 = vmul.f32 %v20, %v24
  %v33 = vmul.f32 %v21, %v24
  %v34 = vld [vmem:[%s2] sm:$0x1]
  %v36 = vperm.slane %v34, 0
  %v38 = vadd.f32 %v26, %v36
  %v39 = vadd.f32 %v27, %v36
  %v40 = vadd.f32 %v28, %v36
  %v41 = vadd.f32 %v29, %v36
  %v42 = vadd.f32 %v30, %v36
  %v43 = vadd.f32 %v31, %v36
  %v44 = vadd.f32 %v32, %v36
  %v45 = vadd.f32 %v33, %v36
  %46 = vst [vmem:[%s3] sm:$0xff] %v38
  %47 = vst [vmem:[%s3 + $0x8] sm:$0xff] %v39
  %48 = vst [vmem:[%s3 + $0x10] sm:$0xff] %v40
  %49 = vst [vmem:[%s3 + $0x18] sm:$0xff] %v41
  %50 = vst [vmem:[%s3 + $0x20] sm:$0xff] %v42
  %51 = vst [vmem:[%s3 + $0x28] sm:$0xff] %v43
  %52 = vst [vmem:[%s3 + $0x30] sm:$0xff] %v44
  %53 = vst [vmem:[%s3 + $0x38] sm:$0xff] %v45
  // Predicated region
  $region14: #{conv_block_forward.3} parent=0 // pred_check
    _
  $region15: #{conv_block_forward.3} parent=0 // pred_check_branch
    %55 = sbr.rel (0) target = $region17
  $region16: #{conv_block_forward.3} parent=0 // pred_region
    _
  $region17: #{conv_block_forward.3} parent=0 // pred_fallthru
    _
  // Predicated region
  $region18: #{conv_block_forward.3} parent=0 // pred_check
    _
  $region19: #{conv_block_forward.3} parent=0 // pred_check_branch
    %57 = sbr.rel (0) target = $region21
  $region20: #{conv_block_forward.3} parent=0 // pred_region
    _
  $region21: #{conv_block_forward.3} parent=0 // pred_fallthru
    _

</llo_original>
